<compile_context>
chip_gen: v6e
topology: v6e:2x2x1
jax: 0.10.0
libtpu: 0.0.40
codegen_flags: <defaults>
</compile_context>

<pallas_src>
import jax
import jax.numpy as jnp
from jax import lax
from jax.experimental import pallas as pl
from jax.experimental.pallas import tpu as pltpu

PAD = 2  # spatial halo: padding == dilation == 2


# -----------------------------------------------------------------------------
# Lower one dilated 3x3 conv layer to 3 per-row banded matmuls (built in wrapper)
# -----------------------------------------------------------------------------
def _build_banded_weights(w_hwio, W):
    """Returns M of shape (3, (W+2*PAD)*Cin, W*Cout) such that, for activations
    stored row-major as (H_padded, (W+2*PAD)*C) (NHWC rows, channels fastest),
        out_row[h] = sum_kh  act_padded[h + 2*kh] @ M[kh]
    reproduces Conv2d(k=3, stride=1, dilation=2, padding=2)."""
    KH, KW, Cin, Cout = w_hwio.shape
    Wp = W + 2 * PAD
    wp = jnp.arange(Wp)[:, None, None]      # padded input pixel index
    wo = jnp.arange(W)[None, None, :]       # output pixel index
    kw = jnp.arange(KW)[None, :, None]      # horizontal tap index
    sel = (wp == wo + 2 * kw).astype(w_hwio.dtype)       # (Wp, KW, W)
    M = jnp.einsum("pkw,hkio->hpiwo", sel, w_hwio)       # (KH, Wp, Cin, W, Cout)
    return M.reshape(KH, Wp * Cin, W * Cout)


# -----------------------------------------------------------------------------
# Fused kernel: 3 x (dilated conv + bias + ReLU) + residual gate, one batch elem
# -----------------------------------------------------------------------------
def _simple_attention_kernel(x_ref, m_ref, bias_ref, o_ref, buf_ref):
    # x_ref   : (1, H, W*C)            f32   NHWC rows, channels fastest
    # m_ref   : (L, 3, (W+4)*C, W*C)   bf16  banded conv matrices, all layers
    # bias_ref: (L, 1, W*C)            f32
    # o_ref   : (1, H, W*C)            f32
    # buf_ref : (H+4, (W+4)*C)         f32   VMEM scratch: zero halo + activation
    _, H, WC = o_ref.shape
    Hp, WpC = buf_ref.shape
    r0 = (Hp - H) // 2          # row halo  (= PAD)
    c0 = (WpC - WC) // 2        # col halo  (= PAD * C, channel-interleaved)
    n_layers = m_ref.shape[0]
    n_kh = m_ref.shape[1]

    xv = x_ref[0]                                           # (H, W*C)

    # Zero-filled halo buffer; the activation stays resident in VMEM.
    buf_ref[...] = jnp.zeros_like(buf_ref)
    buf_ref[r0:r0 + H, c0:c0 + WC] = xv

    for layer in range(n_layers):                           # static unroll (3)
        acc = jnp.zeros((H, WC), jnp.float32)
        for kh in range(n_kh):                              # 3 vertical taps
            start = r0 + 2 * (kh - 1)                       # dilation-2, centred
            rows = buf_ref[start:start + H, :].astype(jnp.bfloat16)
            acc = acc + jnp.dot(rows, m_ref[layer, kh],
                                preferred_element_type=jnp.float32)
        act = jnp.maximum(acc + bias_ref[layer], 0.0)       # bias + ReLU, f32
        buf_ref[r0:r0 + H, c0:c0 + WC] = act                # halo stays zero

    b = buf_ref[r0:r0 + H, c0:c0 + WC]
    o_ref[0] = xv + xv * b                                  # fused residual gate


def _fused_call(x2d, m_all, bias_all):
    B, H, WC = x2d.shape
    L, KH, WpC, _ = m_all.shape
    Hp = H + 2 * PAD
    return pl.pallas_call(
        _simple_attention_kernel,
        out_shape=jax.ShapeDtypeStruct((B, H, WC), jnp.float32),
        grid=(B,),
        in_specs=[
            pl.BlockSpec((1, H, WC), lambda b: (b, 0, 0)),          # x
            pl.BlockSpec((L, KH, WpC, WC), lambda b: (0, 0, 0, 0)),  # weights (resident)
            pl.BlockSpec((L, 1, WC), lambda b: (0, 0, 0)),           # biases  (resident)
        ],
        out_specs=pl.BlockSpec((1, H, WC), lambda b: (b, 0, 0)),
        scratch_shapes=[pltpu.VMEM((Hp, WpC), jnp.float32)],
        compiler_params=pltpu.CompilerParams(
            dimension_semantics=("parallel",)),   # batch shards across TCs on v7x
    )(x2d, m_all, bias_all)


# -----------------------------------------------------------------------------
# Module forward: NCHW in / NCHW out, like the PyTorch module
# -----------------------------------------------------------------------------
@jax.jit
def simple_attention_forward(x_nchw, params):
    B, C, H, W = x_nchw.shape
    for w_hwio, _ in params:
        assert w_hwio.shape == (3, 3, C, C)   # module uses Cin == Cout
    x2d = jnp.transpose(x_nchw, (0, 2, 3, 1)).reshape(B, H, W * C)
    m_all = jnp.stack([_build_banded_weights(w, W) for w, _ in params])
    m_all = m_all.astype(jnp.bfloat16)                          # bf16 MXU operands
    bias_all = jnp.stack([jnp.tile(b, W) for _, b in params])[:, None, :]
    out2d = _fused_call(x2d, m_all, bias_all.astype(jnp.float32))
    return jnp.transpose(out2d.reshape(B, H, W, C), (0, 3, 1, 2))


def init_params(dim, key):
    """3 conv layers: weight ~ N(0, 0.001) (GaussianFill), bias = 0."""
    params = []
    for i in range(3):
        k = jax.random.fold_in(key, i)
        # PyTorch Conv2d weight is (Cout, Cin, kH, kW); convert to HWIO
        w_oihw = 0.001 * jax.random.normal(k, (dim, dim, 3, 3), dtype=jnp.float32)
        w_hwio = jnp.transpose(w_oihw, (2, 3, 1, 0))
        bias = jnp.zeros((dim,), dtype=jnp.float32)
        params.append((w_hwio, bias))
    return tuple(params)


# -----------------------------------------------------------------------------
# Pure-JAX reference (correctness check)
# -----------------------------------------------------------------------------
def reference_forward(x_nchw, params):
    x = jnp.transpose(x_nchw, (0, 2, 3, 1))
    b = x
    for w_hwio, bias in params:
        b = lax.conv_general_dilated(
            b, w_hwio, window_strides=(1, 1),
            padding=((2, 2), (2, 2)), rhs_dilation=(2, 2),
            dimension_numbers=("NHWC", "HWIO", "NHWC"))
        b = jnp.maximum(b + bias, 0.0)
    out = x + x * b
    return jnp.transpose(out, (0, 3, 1, 2))


if __name__ == "__main__":
    key = jax.random.PRNGKey(0)
    dim = 4
    B, H, W = 2, 16, 16

    kx, kp = jax.random.split(key)
    x = jax.random.normal(kx, (B, dim, H, W), dtype=jnp.float32)
    params = init_params(dim, kp)

    out = simple_attention_forward(x, params)
    out = jax.block_until_ready(out)

    ref = reference_forward(x, params)
    assert out.shape == (B, dim, H, W)
    # bf16 is only used for the MXU operands of the tiny-magnitude B(x) branch,
    # so the fused kernel stays well within this tolerance.
    assert jnp.allclose(out, ref, atol=1e-4, rtol=1e-4)

    print("KERNEL_OK")
</pallas_src>

<mosaic_0001>
module attributes {stable_mosaic.version = 11 : i64} {
  func.func @_simple_attention_kernel(%arg0: i32, %arg1: memref<1x16x64xf32, #tpu.memory_space<vmem>>, %arg2: memref<3x3x80x64xbf16, #tpu.memory_space<vmem>>, %arg3: memref<3x1x64xf32, #tpu.memory_space<vmem>>, %arg4: memref<1x16x64xf32, #tpu.memory_space<vmem>>, %arg5: memref<20x80xf32, #tpu.memory_space<vmem>>) attributes {dimension_semantics = [#tpu.dimension_semantics<parallel>], iteration_bounds = array<i64: 2>, scalar_prefetch = 0 : i64, scratch_operands = 1 : i64, tpu.core_type = #tpu.core_type<tc>, window_params = [{transform_indices = @transform_0, window_bounds = array<i64: 1, 16, 64>}, {pipeline_mode = #tpu.pipeline_mode<synchronous>, transform_indices = @transform_1, window_bounds = array<i64: 3, 3, 80, 64>}, {pipeline_mode = #tpu.pipeline_mode<synchronous>, transform_indices = @transform_2, window_bounds = array<i64: 3, 1, 64>}, {transform_indices = @transform_3, window_bounds = array<i64: 1, 16, 64>}]} {
    %c0 = arith.constant 0 : index
    %c0_0 = arith.constant 0 : index
    %c0_1 = arith.constant 0 : index
    %0 = vector.load %arg1[%c0, %c0_0, %c0_1] : memref<1x16x64xf32, #tpu.memory_space<vmem>>, vector<1x16x64xf32>
    %1 = vector.shape_cast %0 : vector<1x16x64xf32> to vector<16x64xf32>
    %cst = arith.constant 0.000000e+00 : f32
    %2 = vector.broadcast %cst : f32 to vector<20x80xf32>
    %c0_2 = arith.constant 0 : index
    %c0_3 = arith.constant 0 : index
    %3 = vector.load %arg5[%c0_2, %c0_3] : memref<20x80xf32, #tpu.memory_space<vmem>>, vector<20x80xf32>
    tpu.vector_store %arg5[%c0_2, %c0_3], %2 {strides = array<i32>} : memref<20x80xf32, #tpu.memory_space<vmem>>, vector<20x80xf32>,
    %c2 = arith.constant 2 : index
    %c8 = arith.constant 8 : index
    %4 = vector.load %arg5[%c2, %c8] : memref<20x80xf32, #tpu.memory_space<vmem>>, vector<16x64xf32>
    tpu.vector_store %arg5[%c2, %c8], %1 {strides = array<i32>} : memref<20x80xf32, #tpu.memory_space<vmem>>, vector<16x64xf32>,
    %cst_4 = arith.constant 0.000000e+00 : f32
    %5 = vector.broadcast %cst_4 : f32 to vector<16x64xf32>
    %c0_5 = arith.constant 0 : index
    %c0_6 = arith.constant 0 : index
    %6 = vector.load %arg5[%c0_5, %c0_6] : memref<20x80xf32, #tpu.memory_space<vmem>>, vector<16x80xf32>
    %7 = arith.truncf %6 : vector<16x80xf32> to vector<16x80xbf16>
    %c0_7 = arith.constant 0 : index
    %c0_8 = arith.constant 0 : index
    %c0_9 = arith.constant 0 : index
    %c0_10 = arith.constant 0 : index
    %8 = vector.load %arg2[%c0_7, %c0_8, %c0_9, %c0_10] : memref<3x3x80x64xbf16, #tpu.memory_space<vmem>>, vector<1x1x80x64xbf16>
    %9 = vector.shape_cast %8 : vector<1x1x80x64xbf16> to vector<80x64xbf16>
    %cst_11 = arith.constant dense<0.000000e+00> : vector<16x64xf32>
    %10 = tpu.matmul %7, %9, %cst_11 {dimension_numbers = #tpu.dot_dimension_numbers<[1], [0], [0], [1], [0, 0, 1, 1], [], []>} : vector<16x80xbf16>, vector<80x64xbf16>, vector<16x64xf32> -> vector<16x64xf32>
    %11 = arith.addf %5, %10 : vector<16x64xf32>
    %c2_12 = arith.constant 2 : index
    %c0_13 = arith.constant 0 : index
    %12 = vector.load %arg5[%c2_12, %c0_13] : memref<20x80xf32, #tpu.memory_space<vmem>>, vector<16x80xf32>
    %13 = arith.truncf %12 : vector<16x80xf32> to vector<16x80xbf16>
    %c0_14 = arith.constant 0 : index
    %c1 = arith.constant 1 : index
    %c0_15 = arith.constant 0 : index
    %c0_16 = arith.constant 0 : index
    %14 = vector.load %arg2[%c0_14, %c1, %c0_15, %c0_16] : memref<3x3x80x64xbf16, #tpu.memory_space<vmem>>, vector<1x1x80x64xbf16>
    %15 = vector.shape_cast %14 : vector<1x1x80x64xbf16> to vector<80x64xbf16>
    %cst_17 = arith.constant dense<0.000000e+00> : vector<16x64xf32>
    %16 = tpu.matmul %13, %15, %cst_17 {dimension_numbers = #tpu.dot_dimension_numbers<[1], [0], [0], [1], [0, 0, 1, 1], [], []>} : vector<16x80xbf16>, vector<80x64xbf16>, vector<16x64xf32> -> vector<16x64xf32>
    %17 = arith.addf %11, %16 : vector<16x64xf32>
    %c4 = arith.constant 4 : index
    %c0_18 = arith.constant 0 : index
    %18 = vector.load %arg5[%c4, %c0_18] : memref<20x80xf32, #tpu.memory_space<vmem>>, vector<16x80xf32>
    %19 = arith.truncf %18 : vector<16x80xf32> to vector<16x80xbf16>
    %c0_19 = arith.constant 0 : index
    %c2_20 = arith.constant 2 : index
    %c0_21 = arith.constant 0 : index
    %c0_22 = arith.constant 0 : index
    %20 = vector.load %arg2[%c0_19, %c2_20, %c0_21, %c0_22] : memref<3x3x80x64xbf16, #tpu.memory_space<vmem>>, vector<1x1x80x64xbf16>
    %21 = vector.shape_cast %20 : vector<1x1x80x64xbf16> to vector<80x64xbf16>
    %cst_23 = arith.constant dense<0.000000e+00> : vector<16x64xf32>
    %22 = tpu.matmul %19, %21, %cst_23 {dimension_numbers = #tpu.dot_dimension_numbers<[1], [0], [0], [1], [0, 0, 1, 1], [], []>} : vector<16x80xbf16>, vector<80x64xbf16>, vector<16x64xf32> -> vector<16x64xf32>
    %23 = arith.addf %17, %22 : vector<16x64xf32>
    %c0_24 = arith.constant 0 : index
    %c0_25 = arith.constant 0 : index
    %c0_26 = arith.constant 0 : index
    %24 = vector.load %arg3[%c0_24, %c0_25, %c0_26] : memref<3x1x64xf32, #tpu.memory_space<vmem>>, vector<1x1x64xf32>
    %25 = vector.shape_cast %24 : vector<1x1x64xf32> to vector<1x64xf32>
    %26 = vector.broadcast %25 : vector<1x64xf32> to vector<16x64xf32>
    %27 = arith.addf %23, %26 : vector<16x64xf32>
    %cst_27 = arith.constant 0.000000e+00 : f32
    %28 = vector.broadcast %cst_27 : f32 to vector<16x64xf32>
    %29 = arith.maximumf %27, %28 : vector<16x64xf32>
    %c2_28 = arith.constant 2 : index
    %c8_29 = arith.constant 8 : index
    %30 = vector.load %arg5[%c2_28, %c8_29] : memref<20x80xf32, #tpu.memory_space<vmem>>, vector<16x64xf32>
    tpu.vector_store %arg5[%c2_28, %c8_29], %29 {strides = array<i32>} : memref<20x80xf32, #tpu.memory_space<vmem>>, vector<16x64xf32>,
    %cst_30 = arith.constant 0.000000e+00 : f32
    %31 = vector.broadcast %cst_30 : f32 to vector<16x64xf32>
    %c0_31 = arith.constant 0 : index
    %c0_32 = arith.constant 0 : index
    %32 = vector.load %arg5[%c0_31, %c0_32] : memref<20x80xf32, #tpu.memory_space<vmem>>, vector<16x80xf32>
    %33 = arith.truncf %32 : vector<16x80xf32> to vector<16x80xbf16>
    %c1_33 = arith.constant 1 : index
    %c0_34 = arith.constant 0 : index
    %c0_35 = arith.constant 0 : index
    %c0_36 = arith.constant 0 : index
    %34 = vector.load %arg2[%c1_33, %c0_34, %c0_35, %c0_36] : memref<3x3x80x64xbf16, #tpu.memory_space<vmem>>, vector<1x1x80x64xbf16>
    %35 = vector.shape_cast %34 : vector<1x1x80x64xbf16> to vector<80x64xbf16>
    %cst_37 = arith.constant dense<0.000000e+00> : vector<16x64xf32>
    %36 = tpu.matmul %33, %35, %cst_37 {dimension_numbers = #tpu.dot_dimension_numbers<[1], [0], [0], [1], [0, 0, 1, 1], [], []>} : vector<16x80xbf16>, vector<80x64xbf16>, vector<16x64xf32> -> vector<16x64xf32>
    %37 = arith.addf %31, %36 : vector<16x64xf32>
    %c2_38 = arith.constant 2 : index
    %c0_39 = arith.constant 0 : index
    %38 = vector.load %arg5[%c2_38, %c0_39] : memref<20x80xf32, #tpu.memory_space<vmem>>, vector<16x80xf32>
    %39 = arith.truncf %38 : vector<16x80xf32> to vector<16x80xbf16>
    %c1_40 = arith.constant 1 : index
    %c1_41 = arith.constant 1 : index
    %c0_42 = arith.constant 0 : index
    %c0_43 = arith.constant 0 : index
    %40 = vector.load %arg2[%c1_40, %c1_41, %c0_42, %c0_43] : memref<3x3x80x64xbf16, #tpu.memory_space<vmem>>, vector<1x1x80x64xbf16>
    %41 = vector.shape_cast %40 : vector<1x1x80x64xbf16> to vector<80x64xbf16>
    %cst_44 = arith.constant dense<0.000000e+00> : vector<16x64xf32>
    %42 = tpu.matmul %39, %41, %cst_44 {dimension_numbers = #tpu.dot_dimension_numbers<[1], [0], [0], [1], [0, 0, 1, 1], [], []>} : vector<16x80xbf16>, vector<80x64xbf16>, vector<16x64xf32> -> vector<16x64xf32>
    %43 = arith.addf %37, %42 : vector<16x64xf32>
    %c4_45 = arith.constant 4 : index
    %c0_46 = arith.constant 0 : index
    %44 = vector.load %arg5[%c4_45, %c0_46] : memref<20x80xf32, #tpu.memory_space<vmem>>, vector<16x80xf32>
    %45 = arith.truncf %44 : vector<16x80xf32> to vector<16x80xbf16>
    %c1_47 = arith.constant 1 : index
    %c2_48 = arith.constant 2 : index
    %c0_49 = arith.constant 0 : index
    %c0_50 = arith.constant 0 : index
    %46 = vector.load %arg2[%c1_47, %c2_48, %c0_49, %c0_50] : memref<3x3x80x64xbf16, #tpu.memory_space<vmem>>, vector<1x1x80x64xbf16>
    %47 = vector.shape_cast %46 : vector<1x1x80x64xbf16> to vector<80x64xbf16>
    %cst_51 = arith.constant dense<0.000000e+00> : vector<16x64xf32>
    %48 = tpu.matmul %45, %47, %cst_51 {dimension_numbers = #tpu.dot_dimension_numbers<[1], [0], [0], [1], [0, 0, 1, 1], [], []>} : vector<16x80xbf16>, vector<80x64xbf16>, vector<16x64xf32> -> vector<16x64xf32>
    %49 = arith.addf %43, %48 : vector<16x64xf32>
    %c1_52 = arith.constant 1 : index
    %c0_53 = arith.constant 0 : index
    %c0_54 = arith.constant 0 : index
    %50 = vector.load %arg3[%c1_52, %c0_53, %c0_54] : memref<3x1x64xf32, #tpu.memory_space<vmem>>, vector<1x1x64xf32>
    %51 = vector.shape_cast %50 : vector<1x1x64xf32> to vector<1x64xf32>
    %52 = vector.broadcast %51 : vector<1x64xf32> to vector<16x64xf32>
    %53 = arith.addf %49, %52 : vector<16x64xf32>
    %cst_55 = arith.constant 0.000000e+00 : f32
    %54 = vector.broadcast %cst_55 : f32 to vector<16x64xf32>
    %55 = arith.maximumf %53, %54 : vector<16x64xf32>
    %c2_56 = arith.constant 2 : index
    %c8_57 = arith.constant 8 : index
    %56 = vector.load %arg5[%c2_56, %c8_57] : memref<20x80xf32, #tpu.memory_space<vmem>>, vector<16x64xf32>
    tpu.vector_store %arg5[%c2_56, %c8_57], %55 {strides = array<i32>} : memref<20x80xf32, #tpu.memory_space<vmem>>, vector<16x64xf32>,
    %cst_58 = arith.constant 0.000000e+00 : f32
    %57 = vector.broadcast %cst_58 : f32 to vector<16x64xf32>
    %c0_59 = arith.constant 0 : index
    %c0_60 = arith.constant 0 : index
    %58 = vector.load %arg5[%c0_59, %c0_60] : memref<20x80xf32, #tpu.memory_space<vmem>>, vector<16x80xf32>
    %59 = arith.truncf %58 : vector<16x80xf32> to vector<16x80xbf16>
    %c2_61 = arith.constant 2 : index
    %c0_62 = arith.constant 0 : index
    %c0_63 = arith.constant 0 : index
    %c0_64 = arith.constant 0 : index
    %60 = vector.load %arg2[%c2_61, %c0_62, %c0_63, %c0_64] : memref<3x3x80x64xbf16, #tpu.memory_space<vmem>>, vector<1x1x80x64xbf16>
    %61 = vector.shape_cast %60 : vector<1x1x80x64xbf16> to vector<80x64xbf16>
    %cst_65 = arith.constant dense<0.000000e+00> : vector<16x64xf32>
    %62 = tpu.matmul %59, %61, %cst_65 {dimension_numbers = #tpu.dot_dimension_numbers<[1], [0], [0], [1], [0, 0, 1, 1], [], []>} : vector<16x80xbf16>, vector<80x64xbf16>, vector<16x64xf32> -> vector<16x64xf32>
    %63 = arith.addf %57, %62 : vector<16x64xf32>
    %c2_66 = arith.constant 2 : index
    %c0_67 = arith.constant 0 : index
    %64 = vector.load %arg5[%c2_66, %c0_67] : memref<20x80xf32, #tpu.memory_space<vmem>>, vector<16x80xf32>
    %65 = arith.truncf %64 : vector<16x80xf32> to vector<16x80xbf16>
    %c2_68 = arith.constant 2 : index
    %c1_69 = arith.constant 1 : index
    %c0_70 = arith.constant 0 : index
    %c0_71 = arith.constant 0 : index
    %66 = vector.load %arg2[%c2_68, %c1_69, %c0_70, %c0_71] : memref<3x3x80x64xbf16, #tpu.memory_space<vmem>>, vector<1x1x80x64xbf16>
    %67 = vector.shape_cast %66 : vector<1x1x80x64xbf16> to vector<80x64xbf16>
    %cst_72 = arith.constant dense<0.000000e+00> : vector<16x64xf32>
    %68 = tpu.matmul %65, %67, %cst_72 {dimension_numbers = #tpu.dot_dimension_numbers<[1], [0], [0], [1], [0, 0, 1, 1], [], []>} : vector<16x80xbf16>, vector<80x64xbf16>, vector<16x64xf32> -> vector<16x64xf32>
    %69 = arith.addf %63, %68 : vector<16x64xf32>
    %c4_73 = arith.constant 4 : index
    %c0_74 = arith.constant 0 : index
    %70 = vector.load %arg5[%c4_73, %c0_74] : memref<20x80xf32, #tpu.memory_space<vmem>>, vector<16x80xf32>
    %71 = arith.truncf %70 : vector<16x80xf32> to vector<16x80xbf16>
    %c2_75 = arith.constant 2 : index
    %c2_76 = arith.constant 2 : index
    %c0_77 = arith.constant 0 : index
    %c0_78 = arith.constant 0 : index
    %72 = vector.load %arg2[%c2_75, %c2_76, %c0_77, %c0_78] : memref<3x3x80x64xbf16, #tpu.memory_space<vmem>>, vector<1x1x80x64xbf16>
    %73 = vector.shape_cast %72 : vector<1x1x80x64xbf16> to vector<80x64xbf16>
    %cst_79 = arith.constant dense<0.000000e+00> : vector<16x64xf32>
    %74 = tpu.matmul %71, %73, %cst_79 {dimension_numbers = #tpu.dot_dimension_numbers<[1], [0], [0], [1], [0, 0, 1, 1], [], []>} : vector<16x80xbf16>, vector<80x64xbf16>, vector<16x64xf32> -> vector<16x64xf32>
    %75 = arith.addf %69, %74 : vector<16x64xf32>
    %c2_80 = arith.constant 2 : index
    %c0_81 = arith.constant 0 : index
    %c0_82 = arith.constant 0 : index
    %76 = vector.load %arg3[%c2_80, %c0_81, %c0_82] : memref<3x1x64xf32, #tpu.memory_space<vmem>>, vector<1x1x64xf32>
    %77 = vector.shape_cast %76 : vector<1x1x64xf32> to vector<1x64xf32>
    %78 = vector.broadcast %77 : vector<1x64xf32> to vector<16x64xf32>
    %79 = arith.addf %75, %78 : vector<16x64xf32>
    %cst_83 = arith.constant 0.000000e+00 : f32
    %80 = vector.broadcast %cst_83 : f32 to vector<16x64xf32>
    %81 = arith.maximumf %79, %80 : vector<16x64xf32>
    %c2_84 = arith.constant 2 : index
    %c8_85 = arith.constant 8 : index
    %82 = vector.load %arg5[%c2_84, %c8_85] : memref<20x80xf32, #tpu.memory_space<vmem>>, vector<16x64xf32>
    tpu.vector_store %arg5[%c2_84, %c8_85], %81 {strides = array<i32>} : memref<20x80xf32, #tpu.memory_space<vmem>>, vector<16x64xf32>,
    %c2_86 = arith.constant 2 : index
    %c8_87 = arith.constant 8 : index
    %83 = vector.load %arg5[%c2_86, %c8_87] : memref<20x80xf32, #tpu.memory_space<vmem>>, vector<16x64xf32>
    %84 = arith.mulf %1, %83 : vector<16x64xf32>
    %85 = arith.addf %1, %84 : vector<16x64xf32>
    %c0_88 = arith.constant 0 : index
    %c0_89 = arith.constant 0 : index
    %c0_90 = arith.constant 0 : index
    %86 = vector.load %arg4[%c0_88, %c0_89, %c0_90] : memref<1x16x64xf32, #tpu.memory_space<vmem>>, vector<1x16x64xf32>
    %87 = vector.shape_cast %86 : vector<1x16x64xf32> to vector<16x64xf32>
    %88 = vector.shape_cast %85 : vector<16x64xf32> to vector<1x16x64xf32>
    tpu.vector_store %arg4[%c0_88, %c0_89, %c0_90], %88 {strides = array<i32>} : memref<1x16x64xf32, #tpu.memory_space<vmem>>, vector<1x16x64xf32>,
    return
  }
  func.func @transform_0(%arg0: i32) -> (i32, i32, i32) {
    %c0_i32 = arith.constant 0 : i32
    %c0_i32_0 = arith.constant 0 : i32
    %c0_i32_1 = arith.constant 0 : i32
    return %arg0, %c0_i32, %c0_i32_0 : i32, i32, i32
  }
  func.func @transform_1(%arg0: i32) -> (i32, i32, i32, i32) {
    %c0_i32 = arith.constant 0 : i32
    %c0_i32_0 = arith.constant 0 : i32
    %c0_i32_1 = arith.constant 0 : i32
    %c0_i32_2 = arith.constant 0 : i32
    %c0_i32_3 = arith.constant 0 : i32
    return %c0_i32, %c0_i32_0, %c0_i32_1, %c0_i32_2 : i32, i32, i32, i32
  }
  func.func @transform_2(%arg0: i32) -> (i32, i32, i32) {
    %c0_i32 = arith.constant 0 : i32
    %c0_i32_0 = arith.constant 0 : i32
    %c0_i32_1 = arith.constant 0 : i32
    %c0_i32_2 = arith.constant 0 : i32
    return %c0_i32, %c0_i32_0, %c0_i32_1 : i32, i32, i32
  }
  func.func @transform_3(%arg0: i32) -> (i32, i32, i32) {
    %c0_i32 = arith.constant 0 : i32
    %c0_i32_0 = arith.constant 0 : i32
    %c0_i32_1 = arith.constant 0 : i32
    return %arg0, %c0_i32, %c0_i32_0 : i32, i32, i32
  }
}

</mosaic_0001>

<llo_original>
// kernel: tile.18
$region0: #{tile.18}
  #allocation0 [shape = 's32[1]{0}', space=sflag, size = 0x4, scoped, tag = 'scoped memory for tile.18']
  %s0 = inlined_call_operand.vmem [shape: f32[4], index: 0, kind: input, shape index: {}]
  %s1 = inlined_call_operand.vmem [shape: f32[16,4], index: 1, kind: output, shape index: {}]
  // Predicated region
  $region2: #{tile.18} parent=0 // pred_check
    _
  $region3: #{tile.18} parent=0 // pred_check_branch
    %3 = sbr.rel (0) target = $region5
  $region4: #{tile.18} parent=0 // pred_region
    _
  $region5: #{tile.18} parent=0 // pred_fallthru
    _
  %v4 = vld [vmem:[%s0] ss:$0 sm:$0xff]
  %5 = vst [vmem:[%s1] sm:$0xff] %v4
  %s6 = scalar_lea.vmem %s1, 8
  %7 = vst [vmem:[%s6] sm:$0xff] %v4

// kernel: tile.27
$region0: #{tile.27}
  %s0 = inlined_call_operand.vmem [shape: f32[16,4], index: 0, kind: input, shape index: {}]
  %s1 = inlined_call_operand.vmem [shape: f32[1,64], index: 1, kind: output, shape index: {}]
  $region1: #{tile.27} parent=0
    #allocation0 [shape = 'u8[4096]{0}', space=vmem, size = 0x1000, scoped, tag = 'scoped mem for output reshape']
    %v2 = vld [vmem:[%s0] sm:$0x1]
    %vm3 = vcmask 31744
    %4 = vst.msk [vmem:[#allocation0] sm:$0x1] %vm3, %v2
    %s5 = scalar_lea.vmem %s0, 15
    %v6 = vld [vmem:[%s5] sm:$0x1]
    %7 = vrot.lane.b32.xlu0 %v6, 60
    %v8 = vpop.permute.xlu0 %7
    %vm9 = vcmask 523744
    %10 = vst.msk [vmem:[#allocation0] sm:$0x1] %vm9, %v8
    %s11 = scalar_lea.vmem %s0, 14
    %v12 = vld [vmem:[%s11] sm:$0x1]
    %13 = vrot.lane.b32.xlu0 %v12, 56
    %v14 = vpop.permute.xlu0 %13
    %vm15 = vcmask 490944
    %16 = vst.msk [vmem:[#allocation0] sm:$0x1] %vm15, %v14
    %s17 = scalar_lea.vmem %s0, 13
    %v18 = vld [vmem:[%s17] sm:$0x1]
    %19 = vrot.lane.b32.xlu0 %v18, 52
    %v20 = vpop.permute.xlu0 %19
    %vm21 = vcmask 458144
    %22 = vst.msk [vmem:[#allocation0] sm:$0x1] %vm21, %v20
    %s23 = scalar_lea.vmem %s0, 12
    %v24 = vld [vmem:[%s23] sm:$0x1]
    %25 = vrot.lane.b32.xlu0 %v24, 48
    %v26 = vpop.permute.xlu0 %25
    %vm27 = vcmask 425344
    %28 = vst.msk [vmem:[#allocation0] sm:$0x1] %vm27, %v26
    %s29 = scalar_lea.vmem %s0, 11
    %v30 = vld [vmem:[%s29] sm:$0x1]
    %31 = vrot.lane.b32.xlu0 %v30, 44
    %v32 = vpop.permute.xlu0 %31
    %vm33 = vcmask 392544
    %34 = vst.msk [vmem:[#allocation0] sm:$0x1] %vm33, %v32
    %s35 = scalar_lea.vmem %s0, 10
    %v36 = vld [vmem:[%s35] sm:$0x1]
    %37 = vrot.lane.b32.xlu0 %v36, 40
    %v38 = vpop.permute.xlu0 %37
    %vm39 = vcmask 359744
    %40 = vst.msk [vmem:[#allocation0] sm:$0x1] %vm39, %v38
    %s41 = scalar_lea.vmem %s0, 9
    %v42 = vld [vmem:[%s41] sm:$0x1]
    %43 = vrot.lane.b32.xlu0 %v42, 36
    %v44 = vpop.permute.xlu0 %43
    %vm45 = vcmask 326944
    %46 = vst.msk [vmem:[#allocation0] sm:$0x1] %vm45, %v44
    %s47 = scalar_lea.vmem %s0, 8
    %v48 = vld [vmem:[%s47] sm:$0x1]
    %49 = vrot.lane.b32.xlu0 %v48, 32
    %v50 = vpop.permute.xlu0 %49
    %vm51 = vcmask 294144
    %52 = vst.msk [vmem:[#allocation0] sm:$0x1] %vm51, %v50
    %s53 = scalar_lea.vmem %s0, 7
    %v54 = vld [vmem:[%s53] sm:$0x1]
    %55 = vrot.lane.b32.xlu0 %v54, 28
    %v56 = vpop.permute.xlu0 %55
    %vm57 = vcmask 261344
    %58 = vst.msk [vmem:[#allocation0] sm:$0x1] %vm57, %v56
    %s59 = scalar_lea.vmem %s0, 6
    %v60 = vld [vmem:[%s59] sm:$0x1]
    %61 = vrot.lane.b32.xlu0 %v60, 24
    %v62 = vpop.permute.xlu0 %61
    %vm63 = vcmask 228544
    %64 = vst.msk [vmem:[#allocation0] sm:$0x1] %vm63, %v62
    %s65 = scalar_lea.vmem %s0, 5
    %v66 = vld [vmem:[%s65] sm:$0x1]
    %67 = vrot.lane.b32.xlu0 %v66, 20
    %v68 = vpop.permute.xlu0 %67
    %vm69 = vcmask 195744
    %70 = vst.msk [vmem:[#allocation0] sm:$0x1] %vm69, %v68
    %s71 = scalar_lea.vmem %s0, 4
    %v72 = vld [vmem:[%s71] sm:$0x1]
    %73 = vrot.lane.b32.xlu0 %v72, 16
    %v74 = vpop.permute.xlu0 %73
    %vm75 = vcmask 162944
    %76 = vst.msk [vmem:[#allocation0] sm:$0x1] %vm75, %v74
    %s77 = scalar_lea.vmem %s0, 3
    %v78 = vld [vmem:[%s77] sm:$0x1]
    %79 = vrot.lane.b32.xlu0 %v78, 12
    %v80 = vpop.permute.xlu0 %79
    %vm81 = vcmask 130144
    %82 = vst.msk [vmem:[#allocation0] sm:$0x1] %vm81, %v80
    %s83 = scalar_lea.vmem %s0, 2
    %v84 = vld [vmem:[%s83] sm:$0x1]
    %85 = vrot.lane.b32.xlu0 %v84, 8
    %v86 = vpop.permute.xlu0 %85
    %vm87 = vcmask 97344
    %88 = vst.msk [vmem:[#allocation0] sm:$0x1] %vm87, %v86
    %s89 = scalar_lea.vmem %s0, 1
    %v90 = vld [vmem:[%s89] sm:$0x1]
    %91 = vrot.lane.b32.xlu0 %v90, 4
    %v92 = vpop.permute.xlu0 %91
    %vm93 = vcmask 64544
    %94 = vst.msk [vmem:[#allocation0] sm:$0x1] %vm93, %v92
    %s96 = sshll.u32 1, 1
    %s97 = ssub.s32 %s96, 1
    %v99 = vld [vmem:[#allocation0] sm:%s97]
    %s100 = sshll.u32 1, 1
    %s101 = ssub.s32 %s100, 1
    %102 = vst [vmem:[%s1] sm:%s101] %v99

// kernel: simple_attention_forward.1
$region0: #{simple_attention_forward.1}
  #allocation0 [shape = 'u32[]', space=smem, size = 0x4, offset = 0x4, fixed_abs, tag = 'smem constant byte address 0x4 - core index']
  #allocation1 [shape = 'u32[144,128]{1,0:T(1,128)}', space=vmem, size = 0x12000, scoped, tag = 'internal scratch']
  #allocation2 [shape = 'f32[20,80]{1,0:T(8,128)}', space=vmem, size = 0x3000, scoped, tag = 'scratch operand']
  %s0 = inlined_call_operand.vmem [shape: f32[2,16,64], index: 0, kind: input, shape index: {}]
  %s1 = inlined_call_operand.vmem [shape: bf16[3,3,80,64], index: 1, kind: input, shape index: {}]
  %s2 = inlined_call_operand.vmem [shape: f32[3,1,64], index: 2, kind: input, shape index: {}]
  %s3 = inlined_call_operand.vmem [shape: f32[2,16,64], index: 3, kind: output, shape index: {}]
  %s4 = sld [smem:[#allocation0]]
  $region45: #{simple_attention_forward.1} parent=0
    _
  %s6 = ssub.s32 1, %s4
  %s7 = scalar_select 0, %s6, %s4
  loop: start=0, step=1, limit=4
  $region2: #{simple_attention_forward.1} parent=0 // loop_pre_header
    _
  $region3: #{simple_attention_forward.1} parent=0 // loop_header
    %s9 = sphi 0, %s13
    %p10 = scmp.ge.s32.totalorder %s9, 4
    %s19 = sphi 0, %s21
    %s22 = sphi 0, %s19
    %s23 = sphi 0, %s22
    %s39 = sphi 0, %s23
    %s43 = sphi 0, %s43
    %s45 = sphi 0, %s43
    %s46 = sphi 0, %s45
    %s60 = sphi 0, %s46
    %s64 = sphi 0, %s64
    %s66 = sphi 0, %s64
    %s67 = sphi 0, %s66
    %s81 = sphi 0, %s67
    %s87 = sphi 0, %s89
    %s90 = sphi 0, %s87
    %s91 = sphi 0, %s90
    %s107 = sphi 0, %s91
  $region4: #{simple_attention_forward.1} parent=0 // loop_header_branch
    %12 = sbr.rel (%p10) target = $region8
  $region5: #{simple_attention_forward.1} parent=0 // loop_body
    %s14 = ssub.s32 %s9, 1
    %s15 = ssub.s32 %s9, 2
    %s16 = sadd.s32 %s9, 1
    %s17 = ssub.s32 %s9, %s16
    %p18 = scmp.eq.s32.totalorder %s17, 0
    %s20 = sadd.s32 %s19, 1
    %s21 = scalar_select %p18, %s19, %s20
    %p24 = pneg %p18
    %p25 = scmp.eq.s32.totalorder %s9, 1
    %p26 = por %p24, %p25
    %p27 = scmp.ne.s32.totalorder %s19, %s22
    %p28 = scmp.eq.s32.totalorder %s9, 0
    %p29 = por %p27, %p28
    %p30 = scmp.ne.s32.totalorder %s19, %s22
    %p31 = scmp.eq.s32.totalorder %s14, 1
    %p32 = por %p30, %p31
    %p33 = scmp.ne.s32.totalorder %s22, %s23
    %p34 = scmp.eq.s32.totalorder %s14, 0
    %p35 = por %p33, %p34
    %p36 = scmp.ne.s32.totalorder %s22, %s23
    %p37 = scmp.eq.s32.totalorder %s15, 1
    %p38 = por %p36, %p37
    %p40 = scmp.ne.s32.totalorder %s23, %s39
    %p41 = scmp.eq.s32.totalorder %s15, 0
    %p42 = por %p40, %p41
    %s44 = sadd.s32 %s43, 1
    %p47 = scmp.eq.s32.totalorder %s9, 1
    %p48 = scmp.ne.s32.totalorder %s43, %s45
    %p49 = scmp.eq.s32.totalorder %s9, 0
    %p50 = por %p48, %p49
    %p51 = scmp.ne.s32.totalorder %s43, %s45
    %p52 = scmp.eq.s32.totalorder %s14, 1
    %p53 = por %p51, %p52
    %p54 = scmp.ne.s32.totalorder %s45, %s46
    %p55 = scmp.eq.s32.totalorder %s14, 0
    %p56 = por %p54, %p55
    %p57 = scmp.ne.s32.totalorder %s45, %s46
    %p58 = scmp.eq.s32.totalorder %s15, 1
    %p59 = por %p57, %p58
    %p61 = scmp.ne.s32.totalorder %s46, %s60
    %p62 = scmp.eq.s32.totalorder %s15, 0
    %p63 = por %p61, %p62
    %s65 = sadd.s32 %s64, 1
    %p68 = scmp.eq.s32.totalorder %s9, 1
    %p69 = scmp.ne.s32.totalorder %s64, %s66
    %p70 = scmp.eq.s32.totalorder %s9, 0
    %p71 = por %p69, %p70
    %p72 = scmp.ne.s32.totalorder %s64, %s66
    %p73 = scmp.eq.s32.totalorder %s14, 1
    %p74 = por %p72, %p73
    %p75 = scmp.ne.s32.totalorder %s66, %s67
    %p76 = scmp.eq.s32.totalorder %s14, 0
    %p77 = por %p75, %p76
    %p78 = scmp.ne.s32.totalorder %s66, %s67
    %p79 = scmp.eq.s32.totalorder %s15, 1
    %p80 = por %p78, %p79
    %p82 = scmp.ne.s32.totalorder %s67, %s81
    %p83 = scmp.eq.s32.totalorder %s15, 0
    %p84 = por %p82, %p83
    %s85 = ssub.s32 %s9, %s16
    %p86 = scmp.eq.s32.totalorder %s85, 0
    %s88 = sadd.s32 %s87, 1
    %s89 = scalar_select %p86, %s87, %s88
    %p92 = pneg %p86
    %p93 = scmp.eq.s32.totalorder %s9, 1
    %p94 = por %p92, %p93
    %p95 = scmp.ne.s32.totalorder %s87, %s90
    %p96 = scmp.eq.s32.totalorder %s9, 0
    %p97 = por %p95, %p96
    %p98 = scmp.ne.s32.totalorder %s87, %s90
    %p99 = scmp.eq.s32.totalorder %s14, 1
    %p100 = por %p98, %p99
    %p101 = scmp.ne.s32.totalorder %s90, %s91
    %p102 = scmp.eq.s32.totalorder %s14, 0
    %p103 = por %p101, %p102
    %p104 = scmp.ne.s32.totalorder %s90, %s91
    %p105 = scmp.eq.s32.totalorder %s15, 1
    %p106 = por %p104, %p105
    %p108 = scmp.ne.s32.totalorder %s91, %s107
    %p109 = scmp.eq.s32.totalorder %s15, 0
    %p110 = por %p108, %p109
    %p111 = scmp.le.s32.totalorder 1, %s9
    %p112 = scmp.lt.s32.totalorder %s9, 3
    %p113 = pnand %p111, %p112
    %p114 = pneg %p113
    // Predicated region
    $region9: #{simple_attention_forward.1} parent=5 // pred_check
      _
    $region10: #{simple_attention_forward.1} parent=5 // pred_check_branch
      %116 = sbr.rel (%p113) target = $region12
    $region11: #{simple_attention_forward.1} parent=5 // pred_region
      %s117 = ssub.s32 %s9, 1
      // Predicated region
      $region13: #{simple_attention_forward.1} parent=11 // pred_check
        %p118 = pneg %p56
      $region14: #{simple_attention_forward.1} parent=11 // pred_check_branch
        %120 = sbr.rel (%p118) target = $region16
      $region15: #{simple_attention_forward.1} parent=11 // pred_region
        _
      $region16: #{simple_attention_forward.1} parent=11 // pred_fallthru
        _
      // Predicated region
      $region17: #{simple_attention_forward.1} parent=11 // pred_check
        %p121 = pneg %p77
      $region18: #{simple_attention_forward.1} parent=11 // pred_check_branch
        %123 = sbr.rel (%p121) target = $region20
      $region19: #{simple_attention_forward.1} parent=11 // pred_region
        _
      $region20: #{simple_attention_forward.1} parent=11 // pred_fallthru
        _
    $region12: #{simple_attention_forward.1} parent=5 // pred_fallthru
      _
    %p124 = scmp.lt.s32.totalorder %s9, 2
    // Predicated region
    $region21: #{simple_attention_forward.1} parent=5 // pred_check
      %p125 = pneg %p124
    $region22: #{simple_attention_forward.1} parent=5 // pred_check_branch
      %127 = sbr.rel (%p125) target = $region24
    $region23: #{simple_attention_forward.1} parent=5 // pred_region
      // Predicated region
      $region25: #{simple_attention_forward.1} parent=23 // pred_check
        %p128 = pneg %p29
      $region26: #{simple_attention_forward.1} parent=23 // pred_check_branch
        %130 = sbr.rel (%p128) target = $region28
      $region27: #{simple_attention_forward.1} parent=23 // pred_region
        %p131 = scmp.lt.s32.totalorder %s9, 1
        %s132 = scalar_select %p131, %s9, 1
        %s133 = smul.addr %s132, 2
        %s134 = smul.addr %s133, 8
        %s135 = scalar_lea.vmem %s0, %s134
      $region28: #{simple_attention_forward.1} parent=23 // pred_fallthru
        _
    $region24: #{simple_attention_forward.1} parent=5 // pred_fallthru
      _
    %p136 = scmp.le.s32.totalorder 1, %s9
    %p137 = scmp.lt.s32.totalorder %s9, 3
    %p138 = pnand %p136, %p137
    %p139 = pneg %p138
    // Predicated region
    $region29: #{simple_attention_forward.1} parent=5 // pred_check
      _
    $region30: #{simple_attention_forward.1} parent=5 // pred_check_branch
      %141 = sbr.rel (%p138) target = $region32
    $region31: #{simple_attention_forward.1} parent=5 // pred_region
      %s142 = ssub.s32 %s9, 1
      %p143 = scmp.lt.s32.totalorder %s14, 1
      %s144 = scalar_select %p143, %s14, 1
      %s145 = smul.addr %s144, 2
      %s146 = smul.addr %s145, 8
      %s147 = scalar_lea.vmem %s0, %s146
      %p148 = pneg %p35
      %p149 = pneg %p32
      %p150 = pneg %p56
      %p151 = pneg %p53
      %p152 = pneg %p77
      %p153 = pneg %p74
      %p154 = pneg %p103
      %p155 = pneg %p100
      %p156 = scmp.lt.s32.totalorder %s14, 1
      %s157 = scalar_select %p156, %s14, 1
      %s158 = smul.addr %s157, 2
      %s159 = smul.addr %s158, 8
      %s160 = scalar_lea.vmem %s3, %s159
      %p161 = scmp.lt.s32.totalorder %s14, 1
      %s162 = scalar_select %p161, %s14, 1
      %s163 = smul.addr %s162, 2
      %s164 = smul.addr %s163, 8
      %s165 = scalar_lea.vmem %s0, %s164
      %p166 = scmp.lt.s32.totalorder %s14, 1
      %s167 = scalar_select %p166, %s14, 1
      %s168 = smul.addr %s167, 2
      %s169 = smul.addr %s168, 8
      %s170 = scalar_lea.vmem %s3, %s169
      %v172 = vld [vmem:[%s165] sm:$0xff]
      %v173 = vld [vmem:[%s165 + $0x8] sm:$0xff]
      %vm174 = vcmask 654336
      %175 = vst.msk [vmem:[#allocation2] sm:$0xff] %vm174, 0.0
      %176 = vst.msk [vmem:[#allocation2 + $0x8] sm:$0xff] %vm174, 0.0
      %vm177 = vcmask 650240
      %178 = vst.msk [vmem:[#allocation2 + $0x10] sm:$0xf] %vm177, 0.0
      %181 = vrot.lane.b32.xlu0 %v172, 8
      %v182 = vpop.permute.xlu0 %181
      %183 = vrot.lane.b32.xlu0 %v173, 8
      %v184 = vpop.permute.xlu0 %183
      %vm187 = vcmask 588864
      %188 = vst.msk [vmem:[#allocation2 + $0x2] sm:$0xff] %vm187, %v182
      %189 = vst.msk [vmem:[#allocation2 + $0xa] sm:$0xff] %vm187, %v184
      %v190 = vld [vmem:[#allocation2] sm:$0xff]
      %v191 = vld [vmem:[#allocation2 + $0x8] sm:$0xff]
      %v192 = vpack.c.bf16 %v191, %v190
      %v193 = vld [vmem:[%s1] sm:$0xf]
      %v194 = vld [vmem:[%s1 + $0x4] sm:$0xf]
      %v195 = vld [vmem:[%s1 + $0x8] sm:$0xf]
      %v196 = vld [vmem:[%s1 + $0xc] sm:$0xf]
      %v197 = vld [vmem:[%s1 + $0x10] sm:$0xf]
      %v198 = vld [vmem:[%s1 + $0x14] sm:$0xf]
      %v199 = vld [vmem:[%s1 + $0x18] sm:$0xf]
      %v200 = vld [vmem:[%s1 + $0x1c] sm:$0xf]
      %v201 = vld [vmem:[%s1 + $0x20] sm:$0xf]
      %v202 = vld [vmem:[%s1 + $0x24] sm:$0xf]
      %v203 = vld [vmem:[#allocation2 + $0x2] sm:$0xff]
      %v204 = vld [vmem:[#allocation2 + $0xa] sm:$0xff]
      %v205 = vpack.c.bf16 %v204, %v203
      %s206 = scalar_lea.vmem %s1, 40
      %v207 = vld [vmem:[%s206] sm:$0xf]
      %v208 = vld [vmem:[%s206 + $0x4] sm:$0xf]
      %v209 = vld [vmem:[%s206 + $0x8] sm:$0xf]
      %v210 = vld [vmem:[%s206 + $0xc] sm:$0xf]
      %v211 = vld [vmem:[%s206 + $0x10] sm:$0xf]
      %v212 = vld [vmem:[%s206 + $0x14] sm:$0xf]
      %v213 = vld [vmem:[%s206 + $0x18] sm:$0xf]
      %v214 = vld [vmem:[%s206 + $0x1c] sm:$0xf]
      %v215 = vld [vmem:[%s206 + $0x20] sm:$0xf]
      %v216 = vld [vmem:[%s206 + $0x24] sm:$0xf]
      %v227 = vunpack.c.l.b16 %v207
      %v228 = vunpack.c.l.b16 %v208
      %v229 = vunpack.c.l.b16 %v209
      %v230 = vunpack.c.l.b16 %v210
      %v231 = vunpack.c.l.b16 %v211
      %v232 = vunpack.c.l.b16 %v212
      %v233 = vunpack.c.l.b16 %v213
      %v234 = vunpack.c.l.b16 %v214
      %v235 = vunpack.c.l.b16 %v215
      %v236 = vunpack.c.l.b16 %v216
      %v237 = vpack.c.b16 %v228, %v227
      %v238 = vpack.c.b16 %v230, %v229
      %v239 = vpack.c.b16 %v232, %v231
      %v240 = vpack.c.b16 %v234, %v233
      %v241 = vpack.c.b16 %v236, %v235
      %v248 = vsel %vm174, %v205, 0
      %250 = vmatprep.subr.bf16.mxu0 0
      %251 = vmatpush1.bf16.msra.mxu0 0
      %252 = vmatprep.subr.bf16.mxu0 0
      %253 = vmatpush1.bf16.msra.mxu0 0
      %254 = vmatprep.subr.bf16.mxu0 0
      %255 = vmatpush1.bf16.msra.mxu0 0
      %256 = vmatprep.subr.bf16.mxu0 0
      %257 = vmatpush1.bf16.msra.mxu0 %v241
      %258 = vmatprep.subr.bf16.mxu0 0
      %259 = vmatpush1.bf16.msra.mxu0 %v240
      %260 = vmatprep.subr.bf16.mxu0 0
      %261 = vmatpush1.bf16.msra.mxu0 %v239
      %262 = vmatprep.subr.bf16.mxu0 0
      %263 = vmatpush1.bf16.msra.mxu0 %v238
      %264 = vmatprep.subr.bf16.mxu0 0
      %265 = vmatpush1.bf16.msra.mxu0 %v237
      %266 = vmatprep.subr.bf16.mxu0 0
      %267 = vmatpush2.bf16.msra.mxu0 0
      %268 = vmatprep.subr.bf16.mxu0 0
      %269 = vmatpush2.bf16.msra.mxu0 0
      %270 = vmatprep.subr.bf16.mxu0 0
      %271 = vmatpush2.bf16.msra.mxu0 0
      %272 = vmatprep.subr.bf16.mxu0 0
      %273 = vmatpush2.bf16.msra.mxu0 0
      %274 = vmatprep.subr.bf16.mxu0 0
      %275 = vmatpush2.bf16.msra.mxu0 0
      %276 = vmatprep.subr.bf16.mxu0 0
      %277 = vmatpush2.bf16.msra.mxu0 0
      %278 = vmatprep.subr.bf16.mxu0 0
      %279 = vmatpush2.bf16.msra.mxu0 0
      %280 = vmatprep.subr.bf16.mxu0 0
      %281 = vmatpush2.bf16.msra.mxu0 0
      %282 = vmatprep.mubr.bf16.mxu0 0
      %283 = vmatmul.mubr.bf16.gmra.mxu0 %v248
      %v284 = vpop.f32.mrf.mxu0
      %v285 = vadd.f32 0.0, %v284
      %v286 = vpop.f32.mrf.mxu0
      %v287 = vpop.f32.mrf.mxu0
      %v288 = vadd.f32 0.0, %v287
      %v289 = vpop.f32.mrf.mxu0
      %290 = vdwg.mxu0
      %v301 = vunpack.c.l.b16 %v193
      %v302 = vunpack.c.l.b16 %v194
      %v303 = vunpack.c.l.b16 %v195
      %v304 = vunpack.c.l.b16 %v196
      %v305 = vunpack.c.l.b16 %v197
      %v306 = vunpack.c.l.b16 %v198
      %v307 = vunpack.c.l.b16 %v199
      %v308 = vunpack.c.l.b16 %v200
      %v309 = vunpack.c.l.b16 %v201
      %v310 = vunpack.c.l.b16 %v202
      %v311 = vpack.c.b16 %v302, %v301
      %v312 = vpack.c.b16 %v304, %v303
      %v313 = vpack.c.b16 %v306, %v305
      %v314 = vpack.c.b16 %v308, %v307
      %v315 = vpack.c.b16 %v310, %v309
      %v322 = vsel %vm174, %v192, 0
      %324 = vmatprep.subr.bf16.mxu0 0
      %325 = vmatpush1.bf16.msra.mxu0 0
      %326 = vmatprep.subr.bf16.mxu0 0
      %327 = vmatpush1.bf16.msra.mxu0 0
      %328 = vmatprep.subr.bf16.mxu0 0
      %329 = vmatpush1.bf16.msra.mxu0 0
      %330 = vmatprep.subr.bf16.mxu0 0
      %331 = vmatpush1.bf16.msra.mxu0 %v315
      %332 = vmatprep.subr.bf16.mxu0 0
      %333 = vmatpush1.bf16.msra.mxu0 %v314
      %334 = vmatprep.subr.bf16.mxu0 0
      %335 = vmatpush1.bf16.msra.mxu0 %v313
      %336 = vmatprep.subr.bf16.mxu0 0
      %337 = vmatpush1.bf16.msra.mxu0 %v312
      %338 = vmatprep.subr.bf16.mxu0 0
      %339 = vmatpush1.bf16.msra.mxu0 %v311
      %340 = vmatprep.subr.bf16.mxu0 0
      %341 = vmatpush2.bf16.msra.mxu0 0
      %342 = vmatprep.subr.bf16.mxu0 0
      %343 = vmatpush2.bf16.msra.mxu0 0
      %344 = vmatprep.subr.bf16.mxu0 0
      %345 = vmatpush2.bf16.msra.mxu0 0
      %346 = vmatprep.subr.bf16.mxu0 0
      %347 = vmatpush2.bf16.msra.mxu0 0
      %348 = vmatprep.subr.bf16.mxu0 0
      %349 = vmatpush2.bf16.msra.mxu0 0
      %350 = vmatprep.subr.bf16.mxu0 0
      %351 = vmatpush2.bf16.msra.mxu0 0
      %352 = vmatprep.subr.bf16.mxu0 0
      %353 = vmatpush2.bf16.msra.mxu0 0
      %354 = vmatprep.subr.bf16.mxu0 0
      %355 = vmatpush2.bf16.msra.mxu0 0
      %356 = vmatprep.mubr.bf16.mxu0 0
      %357 = vmatmul.mubr.bf16.gmra.mxu0 %v322
      %v358 = vpop.f32.mrf.mxu0
      %v359 = vadd.f32 %v285, %v358
      %v360 = vpop.f32.mrf.mxu0
      %v361 = vpop.f32.mrf.mxu0
      %v362 = vadd.f32 %v288, %v361
      %v363 = vpop.f32.mrf.mxu0
      %364 = vdwg.mxu0
      %v365 = vld [vmem:[#allocation2 + $0x4] sm:$0xff]
      %v366 = vld [vmem:[#allocation2 + $0xc] sm:$0xff]
      %v367 = vpack.c.bf16 %v366, %v365
      %s368 = scalar_lea.vmem %s1, 80
      %v369 = vld [vmem:[%s368] sm:$0xf]
      %v370 = vld [vmem:[%s368 + $0x4] sm:$0xf]
      %v371 = vld [vmem:[%s368 + $0x8] sm:$0xf]
      %v372 = vld [vmem:[%s368 + $0xc] sm:$0xf]
      %v373 = vld [vmem:[%s368 + $0x10] sm:$0xf]
      %v374 = vld [vmem:[%s368 + $0x14] sm:$0xf]
      %v375 = vld [vmem:[%s368 + $0x18] sm:$0xf]
      %v376 = vld [vmem:[%s368 + $0x1c] sm:$0xf]
      %v377 = vld [vmem:[%s368 + $0x20] sm:$0xf]
      %v378 = vld [vmem:[%s368 + $0x24] sm:$0xf]
      %v389 = vunpack.c.l.b16 %v369
      %v390 = vunpack.c.l.b16 %v370
      %v391 = vunpack.c.l.b16 %v371
      %v392 = vunpack.c.l.b16 %v372
      %v393 = vunpack.c.l.b16 %v373
      %v394 = vunpack.c.l.b16 %v374
      %v395 = vunpack.c.l.b16 %v375
      %v396 = vunpack.c.l.b16 %v376
      %v397 = vunpack.c.l.b16 %v377
      %v398 = vunpack.c.l.b16 %v378
      %v399 = vpack.c.b16 %v390, %v389
      %v400 = vpack.c.b16 %v392, %v391
      %v401 = vpack.c.b16 %v394, %v393
      %v402 = vpack.c.b16 %v396, %v395
      %v403 = vpack.c.b16 %v398, %v397
      %v410 = vsel %vm174, %v367, 0
      %412 = vmatprep.subr.bf16.mxu0 0
      %413 = vmatpush1.bf16.msra.mxu0 0
      %414 = vmatprep.subr.bf16.mxu0 0
      %415 = vmatpush1.bf16.msra.mxu0 0
      %416 = vmatprep.subr.bf16.mxu0 0
      %417 = vmatpush1.bf16.msra.mxu0 0
      %418 = vmatprep.subr.bf16.mxu0 0
      %419 = vmatpush1.bf16.msra.mxu0 %v403
      %420 = vmatprep.subr.bf16.mxu0 0
      %421 = vmatpush1.bf16.msra.mxu0 %v402
      %422 = vmatprep.subr.bf16.mxu0 0
      %423 = vmatpush1.bf16.msra.mxu0 %v401
      %424 = vmatprep.subr.bf16.mxu0 0
      %425 = vmatpush1.bf16.msra.mxu0 %v400
      %426 = vmatprep.subr.bf16.mxu0 0
      %427 = vmatpush1.bf16.msra.mxu0 %v399
      %428 = vmatprep.subr.bf16.mxu0 0
      %429 = vmatpush2.bf16.msra.mxu0 0
      %430 = vmatprep.subr.bf16.mxu0 0
      %431 = vmatpush2.bf16.msra.mxu0 0
      %432 = vmatprep.subr.bf16.mxu0 0
      %433 = vmatpush2.bf16.msra.mxu0 0
      %434 = vmatprep.subr.bf16.mxu0 0
      %435 = vmatpush2.bf16.msra.mxu0 0
      %436 = vmatprep.subr.bf16.mxu0 0
      %437 = vmatpush2.bf16.msra.mxu0 0
      %438 = vmatprep.subr.bf16.mxu0 0
      %439 = vmatpush2.bf16.msra.mxu0 0
      %440 = vmatprep.subr.bf16.mxu0 0
      %441 = vmatpush2.bf16.msra.mxu0 0
      %442 = vmatprep.subr.bf16.mxu0 0
      %443 = vmatpush2.bf16.msra.mxu0 0
      %444 = vmatprep.mubr.bf16.mxu0 0
      %445 = vmatmul.mubr.bf16.gmra.mxu0 %v410
      %v446 = vpop.f32.mrf.mxu0
      %v447 = vadd.f32 0.0, %v446
      %v448 = vpop.f32.mrf.mxu0
      %v449 = vpop.f32.mrf.mxu0
      %v450 = vadd.f32 0.0, %v449
      %v451 = vpop.f32.mrf.mxu0
      %452 = vdwg.mxu0
      %v453 = vadd.f32 %v359, %v447
      %v454 = vadd.f32 %v362, %v450
      %v455 = vld [vmem:[%s2] sm:$0x1]
      %v457 = vlaneseq
      %v458 = vshrl.u32 %v457, 7
      %v459 = vsub.s32 0, %v458
      %v460 = vrot.slane %v455, %v459
      %v462 = vadd.f32 %v453, %v460
      %v463 = vadd.f32 %v454, %v460
      %v464 = vmax.f32 %v462, 0.0
      %v465 = vmax.f32 %v463, 0.0
      %468 = vrot.lane.b32.xlu0 %v464, 8
      %v469 = vpop.permute.xlu0 %468
      %470 = vrot.lane.b32.xlu0 %v465, 8
      %v471 = vpop.permute.xlu0 %470
      %474 = vst.msk [vmem:[#allocation2 + $0x2] sm:$0xff] %vm187, %v469
      %475 = vst.msk [vmem:[#allocation2 + $0xa] sm:$0xff] %vm187, %v471
      %v476 = vld [vmem:[#allocation2] sm:$0xff]
      %v477 = vld [vmem:[#allocation2 + $0x8] sm:$0xff]
      %v478 = vpack.c.bf16 %v477, %v476
      %s479 = scalar_lea.vmem %s1, 120
      %v480 = vld [vmem:[%s479] sm:$0xf]
      %v481 = vld [vmem:[%s479 + $0x4] sm:$0xf]
      %v482 = vld [vmem:[%s479 + $0x8] sm:$0xf]
      %v483 = vld [vmem:[%s479 + $0xc] sm:$0xf]
      %v484 = vld [vmem:[%s479 + $0x10] sm:$0xf]
      %v485 = vld [vmem:[%s479 + $0x14] sm:$0xf]
      %v486 = vld [vmem:[%s479 + $0x18] sm:$0xf]
      %v487 = vld [vmem:[%s479 + $0x1c] sm:$0xf]
      %v488 = vld [vmem:[%s479 + $0x20] sm:$0xf]
      %v489 = vld [vmem:[%s479 + $0x24] sm:$0xf]
      %v490 = vld [vmem:[#allocation2 + $0x2] sm:$0xff]
      %v491 = vld [vmem:[#allocation2 + $0xa] sm:$0xff]
      %v492 = vpack.c.bf16 %v491, %v490
      %s493 = scalar_lea.vmem %s1, 160
      %v494 = vld [vmem:[%s493] sm:$0xf]
      %v495 = vld [vmem:[%s493 + $0x4] sm:$0xf]
      %v496 = vld [vmem:[%s493 + $0x8] sm:$0xf]
      %v497 = vld [vmem:[%s493 + $0xc] sm:$0xf]
      %v498 = vld [vmem:[%s493 + $0x10] sm:$0xf]
      %v499 = vld [vmem:[%s493 + $0x14] sm:$0xf]
      %v500 = vld [vmem:[%s493 + $0x18] sm:$0xf]
      %v501 = vld [vmem:[%s493 + $0x1c] sm:$0xf]
      %v502 = vld [vmem:[%s493 + $0x20] sm:$0xf]
      %v503 = vld [vmem:[%s493 + $0x24] sm:$0xf]
      %v514 = vunpack.c.l.b16 %v494
      %v515 = vunpack.c.l.b16 %v495
      %v516 = vunpack.c.l.b16 %v496
      %v517 = vunpack.c.l.b16 %v497
      %v518 = vunpack.c.l.b16 %v498
      %v519 = vunpack.c.l.b16 %v499
      %v520 = vunpack.c.l.b16 %v500
      %v521 = vunpack.c.l.b16 %v501
      %v522 = vunpack.c.l.b16 %v502
      %v523 = vunpack.c.l.b16 %v503
      %v524 = vpack.c.b16 %v515, %v514
      %v525 = vpack.c.b16 %v517, %v516
      %v526 = vpack.c.b16 %v519, %v518
      %v527 = vpack.c.b16 %v521, %v520
      %v528 = vpack.c.b16 %v523, %v522
      %v535 = vsel %vm174, %v492, 0
      %537 = vmatprep.subr.bf16.mxu0 0
      %538 = vmatpush1.bf16.msra.mxu0 0
      %539 = vmatprep.subr.bf16.mxu0 0
      %540 = vmatpush1.bf16.msra.mxu0 0
      %541 = vmatprep.subr.bf16.mxu0 0
      %542 = vmatpush1.bf16.msra.mxu0 0
      %543 = vmatprep.subr.bf16.mxu0 0
      %544 = vmatpush1.bf16.msra.mxu0 %v528
      %545 = vmatprep.subr.bf16.mxu0 0
      %546 = vmatpush1.bf16.msra.mxu0 %v527
      %547 = vmatprep.subr.bf16.mxu0 0
      %548 = vmatpush1.bf16.msra.mxu0 %v526
      %549 = vmatprep.subr.bf16.mxu0 0
      %550 = vmatpush1.bf16.msra.mxu0 %v525
      %551 = vmatprep.subr.bf16.mxu0 0
      %552 = vmatpush1.bf16.msra.mxu0 %v524
      %553 = vmatprep.subr.bf16.mxu0 0
      %554 = vmatpush2.bf16.msra.mxu0 0
      %555 = vmatprep.subr.bf16.mxu0 0
      %556 = vmatpush2.bf16.msra.mxu0 0
      %557 = vmatprep.subr.bf16.mxu0 0
      %558 = vmatpush2.bf16.msra.mxu0 0
      %559 = vmatprep.subr.bf16.mxu0 0
      %560 = vmatpush2.bf16.msra.mxu0 0
      %561 = vmatprep.subr.bf16.mxu0 0
      %562 = vmatpush2.bf16.msra.mxu0 0
      %563 = vmatprep.subr.bf16.mxu0 0
      %564 = vmatpush2.bf16.msra.mxu0 0
      %565 = vmatprep.subr.bf16.mxu0 0
      %566 = vmatpush2.bf16.msra.mxu0 0
      %567 = vmatprep.subr.bf16.mxu0 0
      %568 = vmatpush2.bf16.msra.mxu0 0
      %569 = vmatprep.mubr.bf16.mxu0 0
      %570 = vmatmul.mubr.bf16.gmra.mxu0 %v535
      %v571 = vpop.f32.mrf.mxu0
      %v572 = vadd.f32 0.0, %v571
      %v573 = vpop.f32.mrf.mxu0
      %v574 = vpop.f32.mrf.mxu0
      %v575 = vadd.f32 0.0, %v574
      %v576 = vpop.f32.mrf.mxu0
      %577 = vdwg.mxu0
      %v588 = vunpack.c.l.b16 %v480
      %v589 = vunpack.c.l.b16 %v481
      %v590 = vunpack.c.l.b16 %v482
      %v591 = vunpack.c.l.b16 %v483
      %v592 = vunpack.c.l.b16 %v484
      %v593 = vunpack.c.l.b16 %v485
      %v594 = vunpack.c.l.b16 %v486
      %v595 = vunpack.c.l.b16 %v487
      %v596 = vunpack.c.l.b16 %v488
      %v597 = vunpack.c.l.b16 %v489
      %v598 = vpack.c.b16 %v589, %v588
      %v599 = vpack.c.b16 %v591, %v590
      %v600 = vpack.c.b16 %v593, %v592
      %v601 = vpack.c.b16 %v595, %v594
      %v602 = vpack.c.b16 %v597, %v596
      %v609 = vsel %vm174, %v478, 0
      %611 = vmatprep.subr.bf16.mxu0 0
      %612 = vmatpush1.bf16.msra.mxu0 0
      %613 = vmatprep.subr.bf16.mxu0 0
      %614 = vmatpush1.bf16.msra.mxu0 0
      %615 = vmatprep.subr.bf16.mxu0 0
      %616 = vmatpush1.bf16.msra.mxu0 0
      %617 = vmatprep.subr.bf16.mxu0 0
      %618 = vmatpush1.bf16.msra.mxu0 %v602
      %619 = vmatprep.subr.bf16.mxu0 0
      %620 = vmatpush1.bf16.msra.mxu0 %v601
      %621 = vmatprep.subr.bf16.mxu0 0
      %622 = vmatpush1.bf16.msra.mxu0 %v600
      %623 = vmatprep.subr.bf16.mxu0 0
      %624 = vmatpush1.bf16.msra.mxu0 %v599
      %625 = vmatprep.subr.bf16.mxu0 0
      %626 = vmatpush1.bf16.msra.mxu0 %v598
      %627 = vmatprep.subr.bf16.mxu0 0
      %628 = vmatpush2.bf16.msra.mxu0 0
      %629 = vmatprep.subr.bf16.mxu0 0
      %630 = vmatpush2.bf16.msra.mxu0 0
      %631 = vmatprep.subr.bf16.mxu0 0
      %632 = vmatpush2.bf16.msra.mxu0 0
      %633 = vmatprep.subr.bf16.mxu0 0
      %634 = vmatpush2.bf16.msra.mxu0 0
      %635 = vmatprep.subr.bf16.mxu0 0
      %636 = vmatpush2.bf16.msra.mxu0 0
      %637 = vmatprep.subr.bf16.mxu0 0
      %638 = vmatpush2.bf16.msra.mxu0 0
      %639 = vmatprep.subr.bf16.mxu0 0
      %640 = vmatpush2.bf16.msra.mxu0 0
      %641 = vmatprep.subr.bf16.mxu0 0
      %642 = vmatpush2.bf16.msra.mxu0 0
      %643 = vmatprep.mubr.bf16.mxu0 0
      %644 = vmatmul.mubr.bf16.gmra.mxu0 %v609
      %v645 = vpop.f32.mrf.mxu0
      %v646 = vadd.f32 %v572, %v645
      %v647 = vpop.f32.mrf.mxu0
      %v648 = vpop.f32.mrf.mxu0
      %v649 = vadd.f32 %v575, %v648
      %v650 = vpop.f32.mrf.mxu0
      %651 = vdwg.mxu0
      %v652 = vld [vmem:[#allocation2 + $0x4] sm:$0xff]
      %v653 = vld [vmem:[#allocation2 + $0xc] sm:$0xff]
      %v654 = vpack.c.bf16 %v653, %v652
      %s655 = scalar_lea.vmem %s1, 200
      %v656 = vld [vmem:[%s655] sm:$0xf]
      %v657 = vld [vmem:[%s655 + $0x4] sm:$0xf]
      %v658 = vld [vmem:[%s655 + $0x8] sm:$0xf]
      %v659 = vld [vmem:[%s655 + $0xc] sm:$0xf]
      %v660 = vld [vmem:[%s655 + $0x10] sm:$0xf]
      %v661 = vld [vmem:[%s655 + $0x14] sm:$0xf]
      %v662 = vld [vmem:[%s655 + $0x18] sm:$0xf]
      %v663 = vld [vmem:[%s655 + $0x1c] sm:$0xf]
      %v664 = vld [vmem:[%s655 + $0x20] sm:$0xf]
      %v665 = vld [vmem:[%s655 + $0x24] sm:$0xf]
      %v676 = vunpack.c.l.b16 %v656
      %v677 = vunpack.c.l.b16 %v657
      %v678 = vunpack.c.l.b16 %v658
      %v679 = vunpack.c.l.b16 %v659
      %v680 = vunpack.c.l.b16 %v660
      %v681 = vunpack.c.l.b16 %v661
      %v682 = vunpack.c.l.b16 %v662
      %v683 = vunpack.c.l.b16 %v663
      %v684 = vunpack.c.l.b16 %v664
      %v685 = vunpack.c.l.b16 %v665
      %v686 = vpack.c.b16 %v677, %v676
      %v687 = vpack.c.b16 %v679, %v678
      %v688 = vpack.c.b16 %v681, %v680
      %v689 = vpack.c.b16 %v683, %v682
      %v690 = vpack.c.b16 %v685, %v684
      %v697 = vsel %vm174, %v654, 0
      %699 = vmatprep.subr.bf16.mxu0 0
      %700 = vmatpush1.bf16.msra.mxu0 0
      %701 = vmatprep.subr.bf16.mxu0 0
      %702 = vmatpush1.bf16.msra.mxu0 0
      %703 = vmatprep.subr.bf16.mxu0 0
      %704 = vmatpush1.bf16.msra.mxu0 0
      %705 = vmatprep.subr.bf16.mxu0 0
      %706 = vmatpush1.bf16.msra.mxu0 %v690
      %707 = vmatprep.subr.bf16.mxu0 0
      %708 = vmatpush1.bf16.msra.mxu0 %v689
      %709 = vmatprep.subr.bf16.mxu0 0
      %710 = vmatpush1.bf16.msra.mxu0 %v688
      %711 = vmatprep.subr.bf16.mxu0 0
      %712 = vmatpush1.bf16.msra.mxu0 %v687
      %713 = vmatprep.subr.bf16.mxu0 0
      %714 = vmatpush1.bf16.msra.mxu0 %v686
      %715 = vmatprep.subr.bf16.mxu0 0
      %716 = vmatpush2.bf16.msra.mxu0 0
      %717 = vmatprep.subr.bf16.mxu0 0
      %718 = vmatpush2.bf16.msra.mxu0 0
      %719 = vmatprep.subr.bf16.mxu0 0
      %720 = vmatpush2.bf16.msra.mxu0 0
      %721 = vmatprep.subr.bf16.mxu0 0
      %722 = vmatpush2.bf16.msra.mxu0 0
      %723 = vmatprep.subr.bf16.mxu0 0
      %724 = vmatpush2.bf16.msra.mxu0 0
      %725 = vmatprep.subr.bf16.mxu0 0
      %726 = vmatpush2.bf16.msra.mxu0 0
      %727 = vmatprep.subr.bf16.mxu0 0
      %728 = vmatpush2.bf16.msra.mxu0 0
      %729 = vmatprep.subr.bf16.mxu0 0
      %730 = vmatpush2.bf16.msra.mxu0 0
      %731 = vmatprep.mubr.bf16.mxu0 0
      %732 = vmatmul.mubr.bf16.gmra.mxu0 %v697
      %v733 = vpop.f32.mrf.mxu0
      %v734 = vadd.f32 0.0, %v733
      %v735 = vpop.f32.mrf.mxu0
      %v736 = vpop.f32.mrf.mxu0
      %v737 = vadd.f32 0.0, %v736
      %v738 = vpop.f32.mrf.mxu0
      %739 = vdwg.mxu0
      %v740 = vadd.f32 %v646, %v734
      %v741 = vadd.f32 %v649, %v737
      %s742 = scalar_lea.vmem %s2, 1
      %v743 = vld [vmem:[%s742] sm:$0x1]
      %v745 = vlaneseq
      %v746 = vshrl.u32 %v745, 7
      %v747 = vsub.s32 0, %v746
      %v748 = vrot.slane %v743, %v747
      %v750 = vadd.f32 %v740, %v748
      %v751 = vadd.f32 %v741, %v748
      %v752 = vmax.f32 %v750, 0.0
      %v753 = vmax.f32 %v751, 0.0
      %756 = vrot.lane.b32.xlu0 %v752, 8
      %v757 = vpop.permute.xlu0 %756
      %758 = vrot.lane.b32.xlu0 %v753, 8
      %v759 = vpop.permute.xlu0 %758
      %762 = vst.msk [vmem:[#allocation2 + $0x2] sm:$0xff] %vm187, %v757
      %763 = vst.msk [vmem:[#allocation2 + $0xa] sm:$0xff] %vm187, %v759
      %v764 = vld [vmem:[#allocation2] sm:$0xff]
      %v765 = vld [vmem:[#allocation2 + $0x8] sm:$0xff]
      %v766 = vpack.c.bf16 %v765, %v764
      %s767 = scalar_lea.vmem %s1, 240
      %v768 = vld [vmem:[%s767] sm:$0xf]
      %v769 = vld [vmem:[%s767 + $0x4] sm:$0xf]
      %v770 = vld [vmem:[%s767 + $0x8] sm:$0xf]
      %v771 = vld [vmem:[%s767 + $0xc] sm:$0xf]
      %v772 = vld [vmem:[%s767 + $0x10] sm:$0xf]
      %v773 = vld [vmem:[%s767 + $0x14] sm:$0xf]
      %v774 = vld [vmem:[%s767 + $0x18] sm:$0xf]
      %v775 = vld [vmem:[%s767 + $0x1c] sm:$0xf]
      %v776 = vld [vmem:[%s767 + $0x20] sm:$0xf]
      %v777 = vld [vmem:[%s767 + $0x24] sm:$0xf]
      %v778 = vld [vmem:[#allocation2 + $0x2] sm:$0xff]
      %v779 = vld [vmem:[#allocation2 + $0xa] sm:$0xff]
      %v780 = vpack.c.bf16 %v779, %v778
      %s781 = scalar_lea.vmem %s1, 280
      %v782 = vld [vmem:[%s781] sm:$0xf]
      %v783 = vld [vmem:[%s781 + $0x4] sm:$0xf]
      %v784 = vld [vmem:[%s781 + $0x8] sm:$0xf]
      %v785 = vld [vmem:[%s781 + $0xc] sm:$0xf]
      %v786 = vld [vmem:[%s781 + $0x10] sm:$0xf]
      %v787 = vld [vmem:[%s781 + $0x14] sm:$0xf]
      %v788 = vld [vmem:[%s781 + $0x18] sm:$0xf]
      %v789 = vld [vmem:[%s781 + $0x1c] sm:$0xf]
      %v790 = vld [vmem:[%s781 + $0x20] sm:$0xf]
      %v791 = vld [vmem:[%s781 + $0x24] sm:$0xf]
      %v802 = vunpack.c.l.b16 %v782
      %v803 = vunpack.c.l.b16 %v783
      %v804 = vunpack.c.l.b16 %v784
      %v805 = vunpack.c.l.b16 %v785
      %v806 = vunpack.c.l.b16 %v786
      %v807 = vunpack.c.l.b16 %v787
      %v808 = vunpack.c.l.b16 %v788
      %v809 = vunpack.c.l.b16 %v789
      %v810 = vunpack.c.l.b16 %v790
      %v811 = vunpack.c.l.b16 %v791
      %v812 = vpack.c.b16 %v803, %v802
      %v813 = vpack.c.b16 %v805, %v804
      %v814 = vpack.c.b16 %v807, %v806
      %v815 = vpack.c.b16 %v809, %v808
      %v816 = vpack.c.b16 %v811, %v810
      %v823 = vsel %vm174, %v780, 0
      %825 = vmatprep.subr.bf16.mxu0 0
      %826 = vmatpush1.bf16.msra.mxu0 0
      %827 = vmatprep.subr.bf16.mxu0 0
      %828 = vmatpush1.bf16.msra.mxu0 0
      %829 = vmatprep.subr.bf16.mxu0 0
      %830 = vmatpush1.bf16.msra.mxu0 0
      %831 = vmatprep.subr.bf16.mxu0 0
      %832 = vmatpush1.bf16.msra.mxu0 %v816
      %833 = vmatprep.subr.bf16.mxu0 0
      %834 = vmatpush1.bf16.msra.mxu0 %v815
      %835 = vmatprep.subr.bf16.mxu0 0
      %836 = vmatpush1.bf16.msra.mxu0 %v814
      %837 = vmatprep.subr.bf16.mxu0 0
      %838 = vmatpush1.bf16.msra.mxu0 %v813
      %839 = vmatprep.subr.bf16.mxu0 0
      %840 = vmatpush1.bf16.msra.mxu0 %v812
      %841 = vmatprep.subr.bf16.mxu0 0
      %842 = vmatpush2.bf16.msra.mxu0 0
      %843 = vmatprep.subr.bf16.mxu0 0
      %844 = vmatpush2.bf16.msra.mxu0 0
      %845 = vmatprep.subr.bf16.mxu0 0
      %846 = vmatpush2.bf16.msra.mxu0 0
      %847 = vmatprep.subr.bf16.mxu0 0
      %848 = vmatpush2.bf16.msra.mxu0 0
      %849 = vmatprep.subr.bf16.mxu0 0
      %850 = vmatpush2.bf16.msra.mxu0 0
      %851 = vmatprep.subr.bf16.mxu0 0
      %852 = vmatpush2.bf16.msra.mxu0 0
      %853 = vmatprep.subr.bf16.mxu0 0
      %854 = vmatpush2.bf16.msra.mxu0 0
      %855 = vmatprep.subr.bf16.mxu0 0
      %856 = vmatpush2.bf16.msra.mxu0 0
      %857 = vmatprep.mubr.bf16.mxu0 0
      %858 = vmatmul.mubr.bf16.gmra.mxu0 %v823
      %v859 = vpop.f32.mrf.mxu0
      %v860 = vadd.f32 0.0, %v859
      %v861 = vpop.f32.mrf.mxu0
      %v862 = vpop.f32.mrf.mxu0
      %v863 = vadd.f32 0.0, %v862
      %v864 = vpop.f32.mrf.mxu0
      %865 = vdwg.mxu0
      %v876 = vunpack.c.l.b16 %v768
      %v877 = vunpack.c.l.b16 %v769
      %v878 = vunpack.c.l.b16 %v770
      %v879 = vunpack.c.l.b16 %v771
      %v880 = vunpack.c.l.b16 %v772
      %v881 = vunpack.c.l.b16 %v773
      %v882 = vunpack.c.l.b16 %v774
      %v883 = vunpack.c.l.b16 %v775
      %v884 = vunpack.c.l.b16 %v776
      %v885 = vunpack.c.l.b16 %v777
      %v886 = vpack.c.b16 %v877, %v876
      %v887 = vpack.c.b16 %v879, %v878
      %v888 = vpack.c.b16 %v881, %v880
      %v889 = vpack.c.b16 %v883, %v882
      %v890 = vpack.c.b16 %v885, %v884
      %v897 = vsel %vm174, %v766, 0
      %899 = vmatprep.subr.bf16.mxu0 0
      %900 = vmatpush1.bf16.msra.mxu0 0
      %901 = vmatprep.subr.bf16.mxu0 0
      %902 = vmatpush1.bf16.msra.mxu0 0
      %903 = vmatprep.subr.bf16.mxu0 0
      %904 = vmatpush1.bf16.msra.mxu0 0
      %905 = vmatprep.subr.bf16.mxu0 0
      %906 = vmatpush1.bf16.msra.mxu0 %v890
      %907 = vmatprep.subr.bf16.mxu0 0
      %908 = vmatpush1.bf16.msra.mxu0 %v889
      %909 = vmatprep.subr.bf16.mxu0 0
      %910 = vmatpush1.bf16.msra.mxu0 %v888
      %911 = vmatprep.subr.bf16.mxu0 0
      %912 = vmatpush1.bf16.msra.mxu0 %v887
      %913 = vmatprep.subr.bf16.mxu0 0
      %914 = vmatpush1.bf16.msra.mxu0 %v886
      %915 = vmatprep.subr.bf16.mxu0 0
      %916 = vmatpush2.bf16.msra.mxu0 0
      %917 = vmatprep.subr.bf16.mxu0 0
      %918 = vmatpush2.bf16.msra.mxu0 0
      %919 = vmatprep.subr.bf16.mxu0 0
      %920 = vmatpush2.bf16.msra.mxu0 0
      %921 = vmatprep.subr.bf16.mxu0 0
      %922 = vmatpush2.bf16.msra.mxu0 0
      %923 = vmatprep.subr.bf16.mxu0 0
      %924 = vmatpush2.bf16.msra.mxu0 0
      %925 = vmatprep.subr.bf16.mxu0 0
      %926 = vmatpush2.bf16.msra.mxu0 0
      %927 = vmatprep.subr.bf16.mxu0 0
      %928 = vmatpush2.bf16.msra.mxu0 0
      %929 = vmatprep.subr.bf16.mxu0 0
      %930 = vmatpush2.bf16.msra.mxu0 0
      %931 = vmatprep.mubr.bf16.mxu0 0
      %932 = vmatmul.mubr.bf16.gmra.mxu0 %v897
      %v933 = vpop.f32.mrf.mxu0
      %v934 = vadd.f32 %v860, %v933
      %v935 = vpop.f32.mrf.mxu0
      %v936 = vpop.f32.mrf.mxu0
      %v937 = vadd.f32 %v863, %v936
      %v938 = vpop.f32.mrf.mxu0
      %939 = vdwg.mxu0
      %v940 = vld [vmem:[#allocation2 + $0x4] sm:$0xff]
      %v941 = vld [vmem:[#allocation2 + $0xc] sm:$0xff]
      %v942 = vpack.c.bf16 %v941, %v940
      %s943 = scalar_lea.vmem %s1, 320
      %v944 = vld [vmem:[%s943] sm:$0xf]
      %v945 = vld [vmem:[%s943 + $0x4] sm:$0xf]
      %v946 = vld [vmem:[%s943 + $0x8] sm:$0xf]
      %v947 = vld [vmem:[%s943 + $0xc] sm:$0xf]
      %v948 = vld [vmem:[%s943 + $0x10] sm:$0xf]
      %v949 = vld [vmem:[%s943 + $0x14] sm:$0xf]
      %v950 = vld [vmem:[%s943 + $0x18] sm:$0xf]
      %v951 = vld [vmem:[%s943 + $0x1c] sm:$0xf]
      %v952 = vld [vmem:[%s943 + $0x20] sm:$0xf]
      %v953 = vld [vmem:[%s943 + $0x24] sm:$0xf]
      %v964 = vunpack.c.l.b16 %v944
      %v965 = vunpack.c.l.b16 %v945
      %v966 = vunpack.c.l.b16 %v946
      %v967 = vunpack.c.l.b16 %v947
      %v968 = vunpack.c.l.b16 %v948
      %v969 = vunpack.c.l.b16 %v949
      %v970 = vunpack.c.l.b16 %v950
      %v971 = vunpack.c.l.b16 %v951
      %v972 = vunpack.c.l.b16 %v952
      %v973 = vunpack.c.l.b16 %v953
      %v974 = vpack.c.b16 %v965, %v964
      %v975 = vpack.c.b16 %v967, %v966
      %v976 = vpack.c.b16 %v969, %v968
      %v977 = vpack.c.b16 %v971, %v970
      %v978 = vpack.c.b16 %v973, %v972
      %v985 = vsel %vm174, %v942, 0
      %987 = vmatprep.subr.bf16.mxu0 0
      %988 = vmatpush1.bf16.msra.mxu0 0
      %989 = vmatprep.subr.bf16.mxu0 0
      %990 = vmatpush1.bf16.msra.mxu0 0
      %991 = vmatprep.subr.bf16.mxu0 0
      %992 = vmatpush1.bf16.msra.mxu0 0
      %993 = vmatprep.subr.bf16.mxu0 0
      %994 = vmatpush1.bf16.msra.mxu0 %v978
      %995 = vmatprep.subr.bf16.mxu0 0
      %996 = vmatpush1.bf16.msra.mxu0 %v977
      %997 = vmatprep.subr.bf16.mxu0 0
      %998 = vmatpush1.bf16.msra.mxu0 %v976
      %999 = vmatprep.subr.bf16.mxu0 0
      %1000 = vmatpush1.bf16.msra.mxu0 %v975
      %1001 = vmatprep.subr.bf16.mxu0 0
      %1002 = vmatpush1.bf16.msra.mxu0 %v974
      %1003 = vmatprep.subr.bf16.mxu0 0
      %1004 = vmatpush2.bf16.msra.mxu0 0
      %1005 = vmatprep.subr.bf16.mxu0 0
      %1006 = vmatpush2.bf16.msra.mxu0 0
      %1007 = vmatprep.subr.bf16.mxu0 0
      %1008 = vmatpush2.bf16.msra.mxu0 0
      %1009 = vmatprep.subr.bf16.mxu0 0
      %1010 = vmatpush2.bf16.msra.mxu0 0
      %1011 = vmatprep.subr.bf16.mxu0 0
      %1012 = vmatpush2.bf16.msra.mxu0 0
      %1013 = vmatprep.subr.bf16.mxu0 0
      %1014 = vmatpush2.bf16.msra.mxu0 0
      %1015 = vmatprep.subr.bf16.mxu0 0
      %1016 = vmatpush2.bf16.msra.mxu0 0
      %1017 = vmatprep.subr.bf16.mxu0 0
      %1018 = vmatpush2.bf16.msra.mxu0 0
      %1019 = vmatprep.mubr.bf16.mxu0 0
      %1020 = vmatmul.mubr.bf16.gmra.mxu0 %v985
      %v1021 = vpop.f32.mrf.mxu0
      %v1022 = vadd.f32 0.0, %v1021
      %v1023 = vpop.f32.mrf.mxu0
      %v1024 = vpop.f32.mrf.mxu0
      %v1025 = vadd.f32 0.0, %v1024
      %v1026 = vpop.f32.mrf.mxu0
      %1027 = vdwg.mxu0
      %v1028 = vadd.f32 %v934, %v1022
      %v1029 = vadd.f32 %v937, %v1025
      %s1030 = scalar_lea.vmem %s2, 2
      %v1031 = vld [vmem:[%s1030] sm:$0x1]
      %v1033 = vlaneseq
      %v1034 = vshrl.u32 %v1033, 7
      %v1035 = vsub.s32 0, %v1034
      %v1036 = vrot.slane %v1031, %v1035
      %v1038 = vadd.f32 %v1028, %v1036
      %v1039 = vadd.f32 %v1029, %v1036
      %v1040 = vmax.f32 %v1038, 0.0
      %v1041 = vmax.f32 %v1039, 0.0
      %1044 = vrot.lane.b32.xlu0 %v1040, 8
      %v1045 = vpop.permute.xlu0 %1044
      %1046 = vrot.lane.b32.xlu0 %v1041, 8
      %v1047 = vpop.permute.xlu0 %1046
      %1050 = vst.msk [vmem:[#allocation2 + $0x2] sm:$0xff] %vm187, %v1045
      %1051 = vst.msk [vmem:[#allocation2 + $0xa] sm:$0xff] %vm187, %v1047
      %v1052 = vld [vmem:[#allocation2 + $0x2] sm:$0xff]
      %v1053 = vld [vmem:[#allocation2 + $0xa] sm:$0xff]
      %1056 = vrot.lane.b32.xlu0 %v1052, 120
      %v1057 = vpop.permute.xlu0 %1056
      %1058 = vrot.lane.b32.xlu0 %v1053, 120
      %v1059 = vpop.permute.xlu0 %1058
      %v1062 = vmul.f32 %v172, %v1057
      %v1063 = vmul.f32 %v173, %v1059
      %v1064 = vadd.f32 %v172, %v1062
      %v1065 = vadd.f32 %v173, %v1063
      %vm1066 = vcmask 523264
      %1067 = vst.msk [vmem:[%s170] sm:$0xff] %vm1066, %v1064
      %1068 = vst.msk [vmem:[%s170 + $0x8] sm:$0xff] %vm1066, %v1065
      %p1069 = scmp.lt.s32.totalorder %s14, 1
      %s1070 = scalar_select %p1069, %s14, 1
      %s1071 = smul.addr %s1070, 2
      %s1072 = smul.addr %s1071, 8
      %s1073 = scalar_lea.vmem %s3, %s1072
      // Predicated region
      $region33: #{simple_attention_forward.1} parent=31 // pred_check
        %p1074 = pneg %p100
      $region34: #{simple_attention_forward.1} parent=31 // pred_check_branch
        %1076 = sbr.rel (%p1074) target = $region36
      $region35: #{simple_attention_forward.1} parent=31 // pred_region
        _
      $region36: #{simple_attention_forward.1} parent=31 // pred_fallthru
        _
    $region32: #{simple_attention_forward.1} parent=5 // pred_fallthru
      _
    %p1077 = scmp.le.s32.totalorder 2, %s9
    // Predicated region
    $region37: #{simple_attention_forward.1} parent=5 // pred_check
      %p1078 = pneg %p1077
    $region38: #{simple_attention_forward.1} parent=5 // pred_check_branch
      %1080 = sbr.rel (%p1078) target = $region40
    $region39: #{simple_attention_forward.1} parent=5 // pred_region
      %s1081 = ssub.s32 %s9, 2
      // Predicated region
      $region41: #{simple_attention_forward.1} parent=39 // pred_check
        %p1082 = pneg %p106
      $region42: #{simple_attention_forward.1} parent=39 // pred_check_branch
        %1084 = sbr.rel (%p1082) target = $region44
      $region43: #{simple_attention_forward.1} parent=39 // pred_region
        %p1085 = scmp.lt.s32.totalorder %s15, 1
        %s1086 = scalar_select %p1085, %s15, 1
        %s1087 = smul.addr %s1086, 2
        %s1088 = smul.addr %s1087, 8
        %s1089 = scalar_lea.vmem %s3, %s1088
      $region44: #{simple_attention_forward.1} parent=39 // pred_fallthru
        _
    $region40: #{simple_attention_forward.1} parent=5 // pred_fallthru
      _
  $region6: #{simple_attention_forward.1} parent=0 // loop_footer
    %s13 = sadd.s32 1, %s9
  $region7: #{simple_attention_forward.1} parent=0 // loop_footer_branch
    %8 = sbr.rel target = $region3
  $region8: #{simple_attention_forward.1} parent=0 // loop_exit
    _

</llo_original>
